<compile_context>
chip_gen: v5e
topology: v5e:2x2
jax: 0.10.0
libtpu: 0.0.40
codegen_flags: <defaults>
</compile_context>

<pallas_src>
import numpy as np

import jax
import jax.numpy as jnp
from jax.experimental import pallas as pl
from jax.experimental.pallas import tpu as pltpu

# ----------------------------- config (small, synthetic) -----------------------------
B = 2             # batch
D_EMB = 32        # d_emb
SEQLEN = 8
ADD_CLS = False
S = SEQLEN + 1 if ADD_CLS else SEQLEN
CS = 8            # compressed seq len
CD = 8            # compressed d_emb
N_OUT = 16        # n_output_values
Z = CS * CD       # flattened compressed dim = 64
RMS_EPS = 1e-6
LANES = 128

ACT_W = S * D_EMB + LANES     # input slab width : [emb(256) | eps(64) | pad(64)]
OUT_W = S * D_EMB + LANES     # output slab width: [decomp(256) | logits(16)+pad]


def rounded_square_root(x):
    return int(round(x ** 0.5))


H_C1 = rounded_square_root(D_EMB * CD)    # 16
H_C2 = rounded_square_root(S * CS)        # 8
H_HD = rounded_square_root(Z * N_OUT)     # 32
H_D1 = rounded_square_root(D_EMB * CD)    # 16
H_D2 = rounded_square_root(S * CS)        # 8

# ------------------------- packed-parameter layout (static) --------------------------
# One bf16 buffer of shape (P_ROWS, 128).  Each entry occupies an 8-row-aligned
# row range, zero padded in lanes.  Offsets are Python ints -> static slices.
_ENTRIES = [
    # compress1 as block-diag over sequence positions (right multiply)
    ("c1w1", (S * D_EMB, S * H_C1)), ("c1b1", (1, S * H_C1)),
    ("c1w2", (S * H_C1, S * CD)),                    # its bias folded into c2b1e
    # compress2 as Kronecker-with-I_cd (contraction over s, cd rides along lanes)
    ("c2m1", (S * CD, H_C2 * CD)), ("c2b1e", (1, H_C2 * CD)),
    ("c2m2", (H_C2 * CD, Z)),      ("c2b2", (1, Z)),
    # fused vae_mu | vae_logvar (RMSNorm weight folded into vaew1 rows)
    ("vaew1", (Z, 2 * Z)), ("vaeb1", (1, 2 * Z)),
    ("vaew2", (2 * Z, 2 * Z)), ("vaeb2", (1, 2 * Z)),
    # fused (head layer1 | decompress2 layer1): lanes 0:32 head, 32:96 d2
    ("hw1d2", (Z, LANES)), ("hb1d2", (1, LANES)),
    # head layer2 (rows 32:128 zero) -> logits in lanes 0:16 of a 128-lane row
    ("hw2", (LANES, LANES)), ("hb2", (1, LANES)),
    # decompress2 layer2 (rows 0:32 and 96:128 zero); its bias folded into d1b1e
    ("d2m2p", (LANES, S * CD)),
    # decompress1 as block-diag over sequence positions
    ("d1w1", (S * CD, S * H_D1)), ("d1b1e", (1, S * H_D1)),
    ("d1w2a", (S * H_D1, LANES)), ("d1w2b", (S * H_D1, S * D_EMB - LANES)),
    ("d1b2a", (1, LANES)),        ("d1b2b", (1, S * D_EMB - LANES)),
]


def _align8(n):
    return (n + 7) & ~7


LAYOUT = {}
_off = 0
for _name, (_r, _c) in _ENTRIES:
    assert _c <= LANES
    LAYOUT[_name] = (_off, (_r, _c))
    _off += _align8(_r)
P_ROWS = _align8(_off)   # 1424 rows * 128 lanes * bf16 ~= 356 KB, one DMA


# ------------------------------------ kernel -----------------------------------------
def _gelu(x):
    # Assumed activation of the reference `mlp` (tanh approx; see header note).
    return jax.nn.gelu(x)


def vae_kernel(p_ref, act_ref, out_ref):
    # Slice a parameter out of the packed bf16 slab at its point of use.
    def w(name):
        off, (r, c) = LAYOUT[name]
        return p_ref[off:off + r, 0:c]

    def dot(a, b):
        # bf16 MXU inputs, f32 accumulation.
        return jnp.dot(a.astype(jnp.bfloat16), b, preferred_element_type=jnp.float32)

    act = act_ref[...]                                          # (B, 384) f32
    x = act[:, :S * D_EMB]                                      # (B, 256) emb
    eps = act[:, S * D_EMB:S * D_EMB + Z]                       # (B, 64)  noise

    # ---- compress_d_emb (block-diag over positions) ----
    h = _gelu(dot(x, w("c1w1")) + w("c1b1"))                    # (B, 128)
    x = dot(h, w("c1w2"))                                       # (B, 64); bias folded fwd

    # ---- compress_seq_len (contraction over s; replaces permute+mlp+permute) ----
    h = _gelu(dot(x, w("c2m1")) + w("c2b1e"))                   # (B, 64)
    z = dot(h, w("c2m2")) + w("c2b2")                           # (B, 64) == flattened z

    # ---- RMSNorm (weight folded into vaew1) ----
    z = z * jax.lax.rsqrt(jnp.mean(z * z, axis=-1, keepdims=True) + RMS_EPS)

    # ---- fused vae_mu | vae_logvar ----
    h = _gelu(dot(z, w("vaew1")) + w("vaeb1"))                  # (B, 128)
    ml = dot(h, w("vaew2")) + w("vaeb2")                        # (B, 128) = [mu | logvar]
    mu = ml[:, :Z]
    logvar = ml[:, Z:]
    zc = mu + jnp.exp(0.5 * logvar) * eps                       # reparameterize, (B, 64)

    # ---- fused (head layer1 | decompress_seq_len layer1) ----
    h = _gelu(dot(zc, w("hw1d2")) + w("hb1d2"))                 # (B, 128)
    logits = dot(h, w("hw2")) + w("hb2")                        # (B, 128); lanes 0:16 valid
    y = dot(h, w("d2m2p"))                                      # (B, 64);  bias folded fwd

    # ---- decompress_d_emb (block-diag over positions) ----
    h = _gelu(dot(y, w("d1w1")) + w("d1b1e"))                   # (B, 128)
    dA = dot(h, w("d1w2a")) + w("d1b2a")                        # decomp lanes   0:128
    dB = dot(h, w("d1w2b")) + w("d1b2b")                        # decomp lanes 128:256

    # ---- single lane-dense output slab, 128-lane-aligned unmasked stores ----
    out_ref[:, 0:LANES] = dA
    out_ref[:, LANES:2 * LANES] = dB
    out_ref[:, 2 * LANES:3 * LANES] = logits


# ------------------------------------ wrapper -----------------------------------------
@jax.jit
def the_model_forward(contig, emb, eps, packed_params):
    del contig  # unused by the reference forward (only `emb` is consumed)
    emb2d = emb.reshape(B, S * D_EMB).astype(jnp.float32)          # free reshape in XLA
    eps_pad = jnp.pad(eps.astype(jnp.float32), ((0, 0), (0, LANES - Z)))
    act = jnp.concatenate([emb2d, eps_pad], axis=1)                # (B, 384) one input slab

    out = pl.pallas_call(
        vae_kernel,
        out_shape=jax.ShapeDtypeStruct((B, OUT_W), jnp.float32),
        in_specs=[pl.BlockSpec(memory_space=pltpu.MemorySpace.VMEM)] * 2,
        out_specs=pl.BlockSpec(memory_space=pltpu.MemorySpace.VMEM),
    )(packed_params, act)

    decompressed = out[:, :S * D_EMB].reshape(B, S, D_EMB)
    logits = out[:, S * D_EMB:S * D_EMB + N_OUT]
    return {"logits": logits, "decompressed": decompressed}


# ------------------------------ canonical params & packing ----------------------------
def make_params(key):
    """Canonical (torch-like) parameters: per-mlp w1(in,out), b1(out,), w2, b2."""
    def lin(k, din, dout, scale=0.02):
        kw, kb = jax.random.split(k)
        return (jax.random.normal(kw, (din, dout), jnp.float32) * scale,
                jax.random.normal(kb, (dout,), jnp.float32) * scale)

    def mlp_p(k, din, dh, dout):
        k1, k2 = jax.random.split(k)
        w1, b1 = lin(k1, din, dh)
        w2, b2 = lin(k2, dh, dout)
        return {"w1": w1, "b1": b1, "w2": w2, "b2": b2}

    ks = jax.random.split(key, 7)
    return {
        "compress1":   mlp_p(ks[0], D_EMB, H_C1, CD),
        "compress2":   mlp_p(ks[1], S, H_C2, CS),
        "head":        mlp_p(ks[2], Z, H_HD, N_OUT),
        "decompress1": mlp_p(ks[3], CD, H_D1, D_EMB),
        "decompress2": mlp_p(ks[4], CS, H_D2, S),
        "vae_mu":      mlp_p(ks[5], Z, Z, Z),
        "vae_logvar":  mlp_p(ks[6], Z, Z, Z),
        "norm_w":      jnp.ones((Z,), jnp.float32),
    }


def pack_params(params):
    """Host-side packing of canonical params into one (P_ROWS, 128) bf16 slab.

    All permute/reshape structure of the reference is baked in here (Kronecker /
    block-diag matrices, bias folds), so the kernel is a pure matmul chain.
    """
    g = lambda a: np.asarray(a, np.float32)
    c1, c2, hd = params["compress1"], params["compress2"], params["head"]
    d1, d2 = params["decompress1"], params["decompress2"]
    vm, vl = params["vae_mu"], params["vae_logvar"]
    eyeS = np.eye(S, dtype=np.float32)
    eyeCD = np.eye(CD, dtype=np.float32)

    # compress1: same (D_EMB->H->CD) map applied at every position s -> block-diag.
    c1w1 = np.kron(eyeS, g(c1["w1"]))                       # (S*D_EMB, S*H_C1)
    c1b1 = np.tile(g(c1["b1"]), S)
    c1w2 = np.kron(eyeS, g(c1["w2"]))                       # (S*H_C1, S*CD)
    c1b2_row = np.tile(g(c1["b2"]), S)                      # folded into c2b1e

    # compress2: contraction over s with cd carried along lanes.
    c2m1 = np.kron(g(c2["w1"]), eyeCD)                      # (S*CD, H_C2*CD)
    c2b1e = c1b2_row @ c2m1 + np.repeat(g(c2["b1"]), CD)    # fold c1.b2 forward
    c2m2 = np.kron(g(c2["w2"]), eyeCD)                      # (H_C2*CD, CS*CD)
    c2b2 = np.repeat(g(c2["b2"]), CD)

    # fused vae_mu | vae_logvar (RMSNorm weight folded into W1 rows).
    nw = g(params["norm_w"])[:, None]
    vaew1 = np.concatenate([g(vm["w1"]), g(vl["w1"])], axis=1) * nw
    vaeb1 = np.concatenate([g(vm["b1"]), g(vl["b1"])])
    vaew2 = np.zeros((2 * Z, 2 * Z), np.float32)
    vaew2[:Z, :Z] = g(vm["w2"]); vaew2[Z:, Z:] = g(vl["w2"])
    vaeb2 = np.concatenate([g(vm["b2"]), g(vl["b2"])])

    # fused (head layer1 | decompress2 layer1): both consume zc and apply GELU.
    d2m1 = np.kron(g(d2["w1"]), eyeCD)                      # (CS*CD, H_D2*CD)
    hw1d2 = np.zeros((Z, LANES), np.float32)
    hw1d2[:, :H_HD] = g(hd["w1"])
    hw1d2[:, H_HD:H_HD + Z] = d2m1
    hb1d2 = np.zeros((LANES,), np.float32)
    hb1d2[:H_HD] = g(hd["b1"])
    hb1d2[H_HD:H_HD + Z] = np.repeat(g(d2["b1"]), CD)

    # head layer2: only rows 0:32 (head hidden) nonzero; logits padded to 128 lanes.
    hw2 = np.zeros((LANES, LANES), np.float32)
    hw2[:H_HD, :N_OUT] = g(hd["w2"])
    hb2 = np.zeros((LANES,), np.float32); hb2[:N_OUT] = g(hd["b2"])

    # decompress2 layer2: only rows 32:96 (d2 hidden) nonzero; bias folded forward.
    d2m2p = np.zeros((LANES, S * CD), np.float32)
    d2m2p[H_HD:H_HD + Z, :] = np.kron(g(d2["w2"]), eyeCD)   # (H_D2*CD, S*CD)
    d2b2_row = np.repeat(g(d2["b2"]), CD)                   # folded into d1b1e

    # decompress1: block-diag over positions.
    d1w1 = np.kron(eyeS, g(d1["w1"]))                       # (S*CD, S*H_D1)
    d1b1e = d2b2_row @ d1w1 + np.tile(g(d1["b1"]), S)       # fold d2.b2 forward
    d1w2 = np.kron(eyeS, g(d1["w2"]))                       # (S*H_D1, S*D_EMB)
    d1b2 = np.tile(g(d1["b2"]), S)

    buf = np.zeros((P_ROWS, LANES), np.float32)

    def put(name, arr):
        arr = np.asarray(arr, np.float32)
        off, (r, c) = LAYOUT[name]
        assert arr.shape == (r, c), (name, arr.shape, (r, c))
        buf[off:off + r, :c] = arr

    put("c1w1", c1w1); put("c1b1", c1b1[None, :])
    put("c1w2", c1w2)
    put("c2m1", c2m1); put("c2b1e", c2b1e[None, :])
    put("c2m2", c2m2); put("c2b2", c2b2[None, :])
    put("vaew1", vaew1); put("vaeb1", vaeb1[None, :])
    put("vaew2", vaew2); put("vaeb2", vaeb2[None, :])
    put("hw1d2", hw1d2); put("hb1d2", hb1d2[None, :])
    put("hw2", hw2); put("hb2", hb2[None, :])
    put("d2m2p", d2m2p)
    put("d1w1", d1w1); put("d1b1e", d1b1e[None, :])
    put("d1w2a", d1w2[:, :LANES]); put("d1w2b", d1w2[:, LANES:])
    put("d1b2a", d1b2[None, :LANES]); put("d1b2b", d1b2[None, LANES:])

    # bf16 slab: halves the largest DMA; dots accumulate in f32 in-kernel.
    return jnp.asarray(buf).astype(jnp.bfloat16)


# --------------------------- pure-JAX reference (torch-faithful) ----------------------
def _mlp_ref(x, p):
    h = _gelu(x @ p["w1"] + p["b1"])
    return h @ p["w2"] + p["b2"]


def reference_forward(emb, eps, params):
    x = _mlp_ref(emb, params["compress1"])                 # (B, S, CD)
    x = jnp.transpose(x, (0, 2, 1))                        # (B, CD, S)
    x = _mlp_ref(x, params["compress2"])                   # (B, CD, CS)
    x = jnp.transpose(x, (0, 2, 1))                        # (B, CS, CD)
    z = x.reshape(B, -1)
    z = z * jax.lax.rsqrt(jnp.mean(z * z, -1, keepdims=True) + RMS_EPS) * params["norm_w"]
    mu = _mlp_ref(z, params["vae_mu"])
    logvar = _mlp_ref(z, params["vae_logvar"])
    zc = mu + jnp.exp(0.5 * logvar) * eps
    logits = _mlp_ref(zc, params["head"])
    y = zc.reshape(B, CS, CD)
    y = jnp.transpose(y, (0, 2, 1))
    y = _mlp_ref(y, params["decompress2"])
    y = jnp.transpose(y, (0, 2, 1))
    y = _mlp_ref(y, params["decompress1"])
    return logits, y


# -------------------------------------- main ------------------------------------------
if __name__ == "__main__":
    key = jax.random.PRNGKey(0)
    k_param, k_emb, k_eps, k_contig = jax.random.split(key, 4)

    params = make_params(k_param)
    packed = pack_params(params)

    emb = jax.random.normal(k_emb, (B, S, D_EMB), jnp.float32)
    contig = jax.random.randint(k_contig, (B, SEQLEN), 0, N_OUT, jnp.int32)
    # torch.randn_like(mu) equivalent, generated deterministically outside the kernel.
    eps = jax.random.normal(k_eps, (B, Z), jnp.float32)

    out = the_model_forward(contig, emb, eps, packed)
    jax.block_until_ready(out)

    assert out["logits"].shape == (B, N_OUT)
    assert out["decompressed"].shape == (B, S, D_EMB)

    # Sanity check against a torch-faithful pure-JAX reference.  Tolerance accounts
    # for the bf16 MXU operands in the kernel (f32 accumulation) vs the f32 reference.
    ref_logits, ref_decomp = jax.jit(lambda e, n: reference_forward(e, n, params))(emb, eps)
    np.testing.assert_allclose(np.asarray(out["logits"]), np.asarray(ref_logits),
                               rtol=5e-2, atol=5e-3)
    np.testing.assert_allclose(np.asarray(out["decompressed"]), np.asarray(ref_decomp),
                               rtol=5e-2, atol=5e-3)

    print("KERNEL_OK")
</pallas_src>

<mosaic_0001>
module attributes {stable_mosaic.version = 11 : i64} {
  func.func @vae_kernel(%arg0: memref<1424x128xbf16, #tpu.memory_space<vmem>>, %arg1: memref<2x384xf32, #tpu.memory_space<vmem>>, %arg2: memref<2x384xf32, #tpu.memory_space<vmem>>) attributes {dimension_semantics = [], scalar_prefetch = 0 : i64, scratch_operands = 0 : i64, tpu.core_type = #tpu.core_type<tc>} {
    %c0 = arith.constant 0 : index
    %c0_0 = arith.constant 0 : index
    %0 = vector.load %arg1[%c0, %c0_0] : memref<2x384xf32, #tpu.memory_space<vmem>>, vector<2x384xf32>
    %1 = vector.extract_strided_slice %0 {offsets = [0, 0], sizes = [2, 256], strides = [1, 1]} : vector<2x384xf32> to vector<2x256xf32>
    %2 = vector.extract_strided_slice %0 {offsets = [0, 256], sizes = [2, 64], strides = [1, 1]} : vector<2x384xf32> to vector<2x64xf32>
    %c0_1 = arith.constant 0 : index
    %c0_2 = arith.constant 0 : index
    %3 = vector.load %arg0[%c0_1, %c0_2] : memref<1424x128xbf16, #tpu.memory_space<vmem>>, vector<256x128xbf16>
    %4 = arith.truncf %1 : vector<2x256xf32> to vector<2x256xbf16>
    %cst = arith.constant dense<0.000000e+00> : vector<2x128xf32>
    %5 = tpu.matmul %4, %3, %cst {dimension_numbers = #tpu.dot_dimension_numbers<[1], [0], [0], [1], [0, 0, 1, 1], [], []>} : vector<2x256xbf16>, vector<256x128xbf16>, vector<2x128xf32> -> vector<2x128xf32>
    %c256 = arith.constant 256 : index
    %c0_3 = arith.constant 0 : index
    %6 = vector.load %arg0[%c256, %c0_3] : memref<1424x128xbf16, #tpu.memory_space<vmem>>, vector<1x128xbf16>
    %7 = arith.extf %6 : vector<1x128xbf16> to vector<1x128xf32>
    %8 = vector.broadcast %7 : vector<1x128xf32> to vector<2x128xf32>
    %9 = arith.addf %5, %8 : vector<2x128xf32>
    %10 = arith.mulf %9, %9 : vector<2x128xf32>
    %11 = arith.mulf %9, %10 : vector<2x128xf32>
    %cst_4 = arith.constant 4.471500e-02 : f32
    %12 = vector.broadcast %cst_4 : f32 to vector<2x128xf32>
    %13 = arith.mulf %12, %11 : vector<2x128xf32>
    %14 = arith.addf %9, %13 : vector<2x128xf32>
    %cst_5 = arith.constant 0.797884583 : f32
    %15 = vector.broadcast %cst_5 : f32 to vector<2x128xf32>
    %16 = arith.mulf %15, %14 : vector<2x128xf32>
    %17 = math.tanh %16 : vector<2x128xf32>
    %cst_6 = arith.constant 1.000000e+00 : f32
    %18 = vector.broadcast %cst_6 : f32 to vector<2x128xf32>
    %19 = arith.addf %18, %17 : vector<2x128xf32>
    %cst_7 = arith.constant 5.000000e-01 : f32
    %20 = vector.broadcast %cst_7 : f32 to vector<2x128xf32>
    %21 = arith.mulf %20, %19 : vector<2x128xf32>
    %22 = arith.mulf %9, %21 : vector<2x128xf32>
    %c264 = arith.constant 264 : index
    %c0_8 = arith.constant 0 : index
    %23 = vector.load %arg0[%c264, %c0_8] : memref<1424x128xbf16, #tpu.memory_space<vmem>>, vector<128x64xbf16>
    %24 = arith.truncf %22 : vector<2x128xf32> to vector<2x128xbf16>
    %cst_9 = arith.constant dense<0.000000e+00> : vector<2x64xf32>
    %25 = tpu.matmul %24, %23, %cst_9 {dimension_numbers = #tpu.dot_dimension_numbers<[1], [0], [0], [1], [0, 0, 1, 1], [], []>} : vector<2x128xbf16>, vector<128x64xbf16>, vector<2x64xf32> -> vector<2x64xf32>
    %c392 = arith.constant 392 : index
    %c0_10 = arith.constant 0 : index
    %26 = vector.load %arg0[%c392, %c0_10] : memref<1424x128xbf16, #tpu.memory_space<vmem>>, vector<64x64xbf16>
    %27 = arith.truncf %25 : vector<2x64xf32> to vector<2x64xbf16>
    %cst_11 = arith.constant dense<0.000000e+00> : vector<2x64xf32>
    %28 = tpu.matmul %27, %26, %cst_11 {dimension_numbers = #tpu.dot_dimension_numbers<[1], [0], [0], [1], [0, 0, 1, 1], [], []>} : vector<2x64xbf16>, vector<64x64xbf16>, vector<2x64xf32> -> vector<2x64xf32>
    %c456 = arith.constant 456 : index
    %c0_12 = arith.constant 0 : index
    %29 = vector.load %arg0[%c456, %c0_12] : memref<1424x128xbf16, #tpu.memory_space<vmem>>, vector<1x64xbf16>
    %30 = arith.extf %29 : vector<1x64xbf16> to vector<1x64xf32>
    %31 = vector.broadcast %30 : vector<1x64xf32> to vector<2x64xf32>
    %32 = arith.addf %28, %31 : vector<2x64xf32>
    %33 = arith.mulf %32, %32 : vector<2x64xf32>
    %34 = arith.mulf %32, %33 : vector<2x64xf32>
    %cst_13 = arith.constant 4.471500e-02 : f32
    %35 = vector.broadcast %cst_13 : f32 to vector<2x64xf32>
    %36 = arith.mulf %35, %34 : vector<2x64xf32>
    %37 = arith.addf %32, %36 : vector<2x64xf32>
    %cst_14 = arith.constant 0.797884583 : f32
    %38 = vector.broadcast %cst_14 : f32 to vector<2x64xf32>
    %39 = arith.mulf %38, %37 : vector<2x64xf32>
    %40 = math.tanh %39 : vector<2x64xf32>
    %cst_15 = arith.constant 1.000000e+00 : f32
    %41 = vector.broadcast %cst_15 : f32 to vector<2x64xf32>
    %42 = arith.addf %41, %40 : vector<2x64xf32>
    %cst_16 = arith.constant 5.000000e-01 : f32
    %43 = vector.broadcast %cst_16 : f32 to vector<2x64xf32>
    %44 = arith.mulf %43, %42 : vector<2x64xf32>
    %45 = arith.mulf %32, %44 : vector<2x64xf32>
    %c464 = arith.constant 464 : index
    %c0_17 = arith.constant 0 : index
    %46 = vector.load %arg0[%c464, %c0_17] : memref<1424x128xbf16, #tpu.memory_space<vmem>>, vector<64x64xbf16>
    %47 = arith.truncf %45 : vector<2x64xf32> to vector<2x64xbf16>
    %cst_18 = arith.constant dense<0.000000e+00> : vector<2x64xf32>
    %48 = tpu.matmul %47, %46, %cst_18 {dimension_numbers = #tpu.dot_dimension_numbers<[1], [0], [0], [1], [0, 0, 1, 1], [], []>} : vector<2x64xbf16>, vector<64x64xbf16>, vector<2x64xf32> -> vector<2x64xf32>
    %c528 = arith.constant 528 : index
    %c0_19 = arith.constant 0 : index
    %49 = vector.load %arg0[%c528, %c0_19] : memref<1424x128xbf16, #tpu.memory_space<vmem>>, vector<1x64xbf16>
    %50 = arith.extf %49 : vector<1x64xbf16> to vector<1x64xf32>
    %51 = vector.broadcast %50 : vector<1x64xf32> to vector<2x64xf32>
    %52 = arith.addf %48, %51 : vector<2x64xf32>
    %53 = arith.mulf %52, %52 : vector<2x64xf32>
    %cst_20 = arith.constant dense<0.000000e+00> : vector<2xf32>
    %54 = vector.multi_reduction <add>, %53, %cst_20 [1] : vector<2x64xf32> to vector<2xf32>
    %55 = vector.shape_cast %54 : vector<2xf32> to vector<2x1xf32>
    %cst_21 = arith.constant 6.400000e+01 : f32
    %56 = vector.broadcast %cst_21 : f32 to vector<2x1xf32>
    %57 = arith.divf %55, %56 : vector<2x1xf32>
    %cst_22 = arith.constant 9.99999997E-7 : f32
    %58 = vector.broadcast %cst_22 : f32 to vector<2x1xf32>
    %59 = arith.addf %57, %58 : vector<2x1xf32>
    %60 = math.rsqrt %59 : vector<2x1xf32>
    %61 = vector.broadcast %60 : vector<2x1xf32> to vector<2x64xf32>
    %62 = arith.mulf %52, %61 : vector<2x64xf32>
    %c536 = arith.constant 536 : index
    %c0_23 = arith.constant 0 : index
    %63 = vector.load %arg0[%c536, %c0_23] : memref<1424x128xbf16, #tpu.memory_space<vmem>>, vector<64x128xbf16>
    %64 = arith.truncf %62 : vector<2x64xf32> to vector<2x64xbf16>
    %cst_24 = arith.constant dense<0.000000e+00> : vector<2x128xf32>
    %65 = tpu.matmul %64, %63, %cst_24 {dimension_numbers = #tpu.dot_dimension_numbers<[1], [0], [0], [1], [0, 0, 1, 1], [], []>} : vector<2x64xbf16>, vector<64x128xbf16>, vector<2x128xf32> -> vector<2x128xf32>
    %c600 = arith.constant 600 : index
    %c0_25 = arith.constant 0 : index
    %66 = vector.load %arg0[%c600, %c0_25] : memref<1424x128xbf16, #tpu.memory_space<vmem>>, vector<1x128xbf16>
    %67 = arith.extf %66 : vector<1x128xbf16> to vector<1x128xf32>
    %68 = vector.broadcast %67 : vector<1x128xf32> to vector<2x128xf32>
    %69 = arith.addf %65, %68 : vector<2x128xf32>
    %70 = arith.mulf %69, %69 : vector<2x128xf32>
    %71 = arith.mulf %69, %70 : vector<2x128xf32>
    %cst_26 = arith.constant 4.471500e-02 : f32
    %72 = vector.broadcast %cst_26 : f32 to vector<2x128xf32>
    %73 = arith.mulf %72, %71 : vector<2x128xf32>
    %74 = arith.addf %69, %73 : vector<2x128xf32>
    %cst_27 = arith.constant 0.797884583 : f32
    %75 = vector.broadcast %cst_27 : f32 to vector<2x128xf32>
    %76 = arith.mulf %75, %74 : vector<2x128xf32>
    %77 = math.tanh %76 : vector<2x128xf32>
    %cst_28 = arith.constant 1.000000e+00 : f32
    %78 = vector.broadcast %cst_28 : f32 to vector<2x128xf32>
    %79 = arith.addf %78, %77 : vector<2x128xf32>
    %cst_29 = arith.constant 5.000000e-01 : f32
    %80 = vector.broadcast %cst_29 : f32 to vector<2x128xf32>
    %81 = arith.mulf %80, %79 : vector<2x128xf32>
    %82 = arith.mulf %69, %81 : vector<2x128xf32>
    %c608 = arith.constant 608 : index
    %c0_30 = arith.constant 0 : index
    %83 = vector.load %arg0[%c608, %c0_30] : memref<1424x128xbf16, #tpu.memory_space<vmem>>, vector<128x128xbf16>
    %84 = arith.truncf %82 : vector<2x128xf32> to vector<2x128xbf16>
    %cst_31 = arith.constant dense<0.000000e+00> : vector<2x128xf32>
    %85 = tpu.matmul %84, %83, %cst_31 {dimension_numbers = #tpu.dot_dimension_numbers<[1], [0], [0], [1], [0, 0, 1, 1], [], []>} : vector<2x128xbf16>, vector<128x128xbf16>, vector<2x128xf32> -> vector<2x128xf32>
    %c736 = arith.constant 736 : index
    %c0_32 = arith.constant 0 : index
    %86 = vector.load %arg0[%c736, %c0_32] : memref<1424x128xbf16, #tpu.memory_space<vmem>>, vector<1x128xbf16>
    %87 = arith.extf %86 : vector<1x128xbf16> to vector<1x128xf32>
    %88 = vector.broadcast %87 : vector<1x128xf32> to vector<2x128xf32>
    %89 = arith.addf %85, %88 : vector<2x128xf32>
    %90 = vector.extract_strided_slice %89 {offsets = [0, 0], sizes = [2, 64], strides = [1, 1]} : vector<2x128xf32> to vector<2x64xf32>
    %91 = vector.extract_strided_slice %89 {offsets = [0, 64], sizes = [2, 64], strides = [1, 1]} : vector<2x128xf32> to vector<2x64xf32>
    %cst_33 = arith.constant 5.000000e-01 : f32
    %92 = vector.broadcast %cst_33 : f32 to vector<2x64xf32>
    %93 = arith.mulf %92, %91 : vector<2x64xf32>
    %94 = math.exp %93 : vector<2x64xf32>
    %95 = arith.mulf %94, %2 : vector<2x64xf32>
    %96 = arith.addf %90, %95 : vector<2x64xf32>
    %c744 = arith.constant 744 : index
    %c0_34 = arith.constant 0 : index
    %97 = vector.load %arg0[%c744, %c0_34] : memref<1424x128xbf16, #tpu.memory_space<vmem>>, vector<64x128xbf16>
    %98 = arith.truncf %96 : vector<2x64xf32> to vector<2x64xbf16>
    %cst_35 = arith.constant dense<0.000000e+00> : vector<2x128xf32>
    %99 = tpu.matmul %98, %97, %cst_35 {dimension_numbers = #tpu.dot_dimension_numbers<[1], [0], [0], [1], [0, 0, 1, 1], [], []>} : vector<2x64xbf16>, vector<64x128xbf16>, vector<2x128xf32> -> vector<2x128xf32>
    %c808 = arith.constant 808 : index
    %c0_36 = arith.constant 0 : index
    %100 = vector.load %arg0[%c808, %c0_36] : memref<1424x128xbf16, #tpu.memory_space<vmem>>, vector<1x128xbf16>
    %101 = arith.extf %100 : vector<1x128xbf16> to vector<1x128xf32>
    %102 = vector.broadcast %101 : vector<1x128xf32> to vector<2x128xf32>
    %103 = arith.addf %99, %102 : vector<2x128xf32>
    %104 = arith.mulf %103, %103 : vector<2x128xf32>
    %105 = arith.mulf %103, %104 : vector<2x128xf32>
    %cst_37 = arith.constant 4.471500e-02 : f32
    %106 = vector.broadcast %cst_37 : f32 to vector<2x128xf32>
    %107 = arith.mulf %106, %105 : vector<2x128xf32>
    %108 = arith.addf %103, %107 : vector<2x128xf32>
    %cst_38 = arith.constant 0.797884583 : f32
    %109 = vector.broadcast %cst_38 : f32 to vector<2x128xf32>
    %110 = arith.mulf %109, %108 : vector<2x128xf32>
    %111 = math.tanh %110 : vector<2x128xf32>
    %cst_39 = arith.constant 1.000000e+00 : f32
    %112 = vector.broadcast %cst_39 : f32 to vector<2x128xf32>
    %113 = arith.addf %112, %111 : vector<2x128xf32>
    %cst_40 = arith.constant 5.000000e-01 : f32
    %114 = vector.broadcast %cst_40 : f32 to vector<2x128xf32>
    %115 = arith.mulf %114, %113 : vector<2x128xf32>
    %116 = arith.mulf %103, %115 : vector<2x128xf32>
    %c816 = arith.constant 816 : index
    %c0_41 = arith.constant 0 : index
    %117 = vector.load %arg0[%c816, %c0_41] : memref<1424x128xbf16, #tpu.memory_space<vmem>>, vector<128x128xbf16>
    %118 = arith.truncf %116 : vector<2x128xf32> to vector<2x128xbf16>
    %cst_42 = arith.constant dense<0.000000e+00> : vector<2x128xf32>
    %119 = tpu.matmul %118, %117, %cst_42 {dimension_numbers = #tpu.dot_dimension_numbers<[1], [0], [0], [1], [0, 0, 1, 1], [], []>} : vector<2x128xbf16>, vector<128x128xbf16>, vector<2x128xf32> -> vector<2x128xf32>
    %c944 = arith.constant 944 : index
    %c0_43 = arith.constant 0 : index
    %120 = vector.load %arg0[%c944, %c0_43] : memref<1424x128xbf16, #tpu.memory_space<vmem>>, vector<1x128xbf16>
    %121 = arith.extf %120 : vector<1x128xbf16> to vector<1x128xf32>
    %122 = vector.broadcast %121 : vector<1x128xf32> to vector<2x128xf32>
    %123 = arith.addf %119, %122 : vector<2x128xf32>
    %c952 = arith.constant 952 : index
    %c0_44 = arith.constant 0 : index
    %124 = vector.load %arg0[%c952, %c0_44] : memref<1424x128xbf16, #tpu.memory_space<vmem>>, vector<128x64xbf16>
    %125 = arith.truncf %116 : vector<2x128xf32> to vector<2x128xbf16>
    %cst_45 = arith.constant dense<0.000000e+00> : vector<2x64xf32>
    %126 = tpu.matmul %125, %124, %cst_45 {dimension_numbers = #tpu.dot_dimension_numbers<[1], [0], [0], [1], [0, 0, 1, 1], [], []>} : vector<2x128xbf16>, vector<128x64xbf16>, vector<2x64xf32> -> vector<2x64xf32>
    %c1080 = arith.constant 1080 : index
    %c0_46 = arith.constant 0 : index
    %127 = vector.load %arg0[%c1080, %c0_46] : memref<1424x128xbf16, #tpu.memory_space<vmem>>, vector<64x128xbf16>
    %128 = arith.truncf %126 : vector<2x64xf32> to vector<2x64xbf16>
    %cst_47 = arith.constant dense<0.000000e+00> : vector<2x128xf32>
    %129 = tpu.matmul %128, %127, %cst_47 {dimension_numbers = #tpu.dot_dimension_numbers<[1], [0], [0], [1], [0, 0, 1, 1], [], []>} : vector<2x64xbf16>, vector<64x128xbf16>, vector<2x128xf32> -> vector<2x128xf32>
    %c1144 = arith.constant 1144 : index
    %c0_48 = arith.constant 0 : index
    %130 = vector.load %arg0[%c1144, %c0_48] : memref<1424x128xbf16, #tpu.memory_space<vmem>>, vector<1x128xbf16>
    %131 = arith.extf %130 : vector<1x128xbf16> to vector<1x128xf32>
    %132 = vector.broadcast %131 : vector<1x128xf32> to vector<2x128xf32>
    %133 = arith.addf %129, %132 : vector<2x128xf32>
    %134 = arith.mulf %133, %133 : vector<2x128xf32>
    %135 = arith.mulf %133, %134 : vector<2x128xf32>
    %cst_49 = arith.constant 4.471500e-02 : f32
    %136 = vector.broadcast %cst_49 : f32 to vector<2x128xf32>
    %137 = arith.mulf %136, %135 : vector<2x128xf32>
    %138 = arith.addf %133, %137 : vector<2x128xf32>
    %cst_50 = arith.constant 0.797884583 : f32
    %139 = vector.broadcast %cst_50 : f32 to vector<2x128xf32>
    %140 = arith.mulf %139, %138 : vector<2x128xf32>
    %141 = math.tanh %140 : vector<2x128xf32>
    %cst_51 = arith.constant 1.000000e+00 : f32
    %142 = vector.broadcast %cst_51 : f32 to vector<2x128xf32>
    %143 = arith.addf %142, %141 : vector<2x128xf32>
    %cst_52 = arith.constant 5.000000e-01 : f32
    %144 = vector.broadcast %cst_52 : f32 to vector<2x128xf32>
    %145 = arith.mulf %144, %143 : vector<2x128xf32>
    %146 = arith.mulf %133, %145 : vector<2x128xf32>
    %c1152 = arith.constant 1152 : index
    %c0_53 = arith.constant 0 : index
    %147 = vector.load %arg0[%c1152, %c0_53] : memref<1424x128xbf16, #tpu.memory_space<vmem>>, vector<128x128xbf16>
    %148 = arith.truncf %146 : vector<2x128xf32> to vector<2x128xbf16>
    %cst_54 = arith.constant dense<0.000000e+00> : vector<2x128xf32>
    %149 = tpu.matmul %148, %147, %cst_54 {dimension_numbers = #tpu.dot_dimension_numbers<[1], [0], [0], [1], [0, 0, 1, 1], [], []>} : vector<2x128xbf16>, vector<128x128xbf16>, vector<2x128xf32> -> vector<2x128xf32>
    %c1408 = arith.constant 1408 : index
    %c0_55 = arith.constant 0 : index
    %150 = vector.load %arg0[%c1408, %c0_55] : memref<1424x128xbf16, #tpu.memory_space<vmem>>, vector<1x128xbf16>
    %151 = arith.extf %150 : vector<1x128xbf16> to vector<1x128xf32>
    %152 = vector.broadcast %151 : vector<1x128xf32> to vector<2x128xf32>
    %153 = arith.addf %149, %152 : vector<2x128xf32>
    %c1280 = arith.constant 1280 : index
    %c0_56 = arith.constant 0 : index
    %154 = vector.load %arg0[%c1280, %c0_56] : memref<1424x128xbf16, #tpu.memory_space<vmem>>, vector<128x128xbf16>
    %155 = arith.truncf %146 : vector<2x128xf32> to vector<2x128xbf16>
    %cst_57 = arith.constant dense<0.000000e+00> : vector<2x128xf32>
    %156 = tpu.matmul %155, %154, %cst_57 {dimension_numbers = #tpu.dot_dimension_numbers<[1], [0], [0], [1], [0, 0, 1, 1], [], []>} : vector<2x128xbf16>, vector<128x128xbf16>, vector<2x128xf32> -> vector<2x128xf32>
    %c1416 = arith.constant 1416 : index
    %c0_58 = arith.constant 0 : index
    %157 = vector.load %arg0[%c1416, %c0_58] : memref<1424x128xbf16, #tpu.memory_space<vmem>>, vector<1x128xbf16>
    %158 = arith.extf %157 : vector<1x128xbf16> to vector<1x128xf32>
    %159 = vector.broadcast %158 : vector<1x128xf32> to vector<2x128xf32>
    %160 = arith.addf %156, %159 : vector<2x128xf32>
    %c0_59 = arith.constant 0 : index
    %c0_60 = arith.constant 0 : index
    %161 = vector.load %arg2[%c0_59, %c0_60] : memref<2x384xf32, #tpu.memory_space<vmem>>, vector<2x128xf32>
    tpu.vector_store %arg2[%c0_59, %c0_60], %153 {strides = array<i32>} : memref<2x384xf32, #tpu.memory_space<vmem>>, vector<2x128xf32>,
    %c0_61 = arith.constant 0 : index
    %c128 = arith.constant 128 : index
    %162 = vector.load %arg2[%c0_61, %c128] : memref<2x384xf32, #tpu.memory_space<vmem>>, vector<2x128xf32>
    tpu.vector_store %arg2[%c0_61, %c128], %160 {strides = array<i32>} : memref<2x384xf32, #tpu.memory_space<vmem>>, vector<2x128xf32>,
    %c0_62 = arith.constant 0 : index
    %c256_63 = arith.constant 256 : index
    %163 = vector.load %arg2[%c0_62, %c256_63] : memref<2x384xf32, #tpu.memory_space<vmem>>, vector<2x128xf32>
    tpu.vector_store %arg2[%c0_62, %c256_63], %123 {strides = array<i32>} : memref<2x384xf32, #tpu.memory_space<vmem>>, vector<2x128xf32>,
    return
  }
}

</mosaic_0001>

<llo_original>
// kernel: the_model_forward.1
$region0: #{the_model_forward.1}
  #allocation0 [shape = 'u32[]', space=smem, size = 0x4, offset = 0x4, fixed_abs, tag = 'smem constant byte address 0x4 - core index']
  #allocation1 [shape = 'u32[72,128]{1,0:T(1,128)}', space=vmem, size = 0x9000, scoped, tag = 'internal scratch']
  %s0 = inlined_call_operand.hbm [shape: bf16[1424,128], index: 0, kind: input, shape index: {}]
  %s1 = inlined_call_operand.vmem [shape: f32[2,384], index: 1, kind: input, shape index: {}]
  %s2 = inlined_call_operand.vmem [shape: f32[2,384], index: 2, kind: output, shape index: {}]
  %s3 = sld [smem:[#allocation0]]
  $region22: #{the_model_forward.1} parent=0
    _
  %s5 = ssub.s32 1, %s3
  %s6 = scalar_select 0, %s5, %s3
  $region1: #{the_model_forward.1} parent=0
    #allocation2 [shape = 'u8[364544]{0}', space=vmem, size = 0x59000, scoped, tag = 'input window, operand 0, single buffered']
    #allocation3 [shape = 's32[1]{0}', space=sflag, size = 0x4, scoped, tag = 'scoped memory for the_model_forward.1']
    %7 = vsyncpa [#allocation3], 0
    // Predicated region
    $region2: #{the_model_forward.1} parent=1 // pred_check
      _
    $region3: #{the_model_forward.1} parent=1 // pred_check_branch
      %9 = sbr.rel (0) target = $region5
    $region4: #{the_model_forward.1} parent=1 // pred_region
      %11 = vsyncadd [#allocation3], 0
      %s12 = sshll.u32 %s0, 4
      %s13 = int_to_ptr.hbm [resolvable:$true] %s12
      %s14 = sshll.u32 [#allocation2], 4
      %s15 = int_to_ptr.vmem [resolvable:$true] %s14
      %20 = dma.hbm_to_vmem [thread:$0]  %s13, 11392, %s15, [#allocation3], 64, 64, 4
    $region5: #{the_model_forward.1} parent=1 // pred_fallthru
      _
    // Predicated region
    $region6: #{the_model_forward.1} parent=1 // pred_check
      _
    $region7: #{the_model_forward.1} parent=1 // pred_check_branch
      %22 = sbr.rel (0) target = $region9
    $region8: #{the_model_forward.1} parent=1 // pred_region
      _
    $region9: #{the_model_forward.1} parent=1 // pred_fallthru
      _
    // Predicated region
    $region10: #{the_model_forward.1} parent=1 // pred_check
      _
    $region11: #{the_model_forward.1} parent=1 // pred_check_branch
      %24 = sbr.rel (0) target = $region13
    $region12: #{the_model_forward.1} parent=1 // pred_region
      %26 = dma.done [#allocation3], 11392
    $region13: #{the_model_forward.1} parent=1 // pred_fallthru
      _
    %v28 = vld [vmem:[%s1] sm:$0x3f]
    %v29 = vld [vmem:[#allocation2] sm:$0xf]
    %v30 = vld [vmem:[#allocation2 + $0x4] sm:$0xf]
    %v31 = vld [vmem:[#allocation2 + $0x8] sm:$0xf]
    %v32 = vld [vmem:[#allocation2 + $0xc] sm:$0xf]
    %v33 = vld [vmem:[#allocation2 + $0x10] sm:$0xf]
    %v34 = vld [vmem:[#allocation2 + $0x14] sm:$0xf]
    %v35 = vld [vmem:[#allocation2 + $0x18] sm:$0xf]
    %v36 = vld [vmem:[#allocation2 + $0x1c] sm:$0xf]
    %v37 = vld [vmem:[#allocation2 + $0x20] sm:$0xf]
    %v38 = vld [vmem:[#allocation2 + $0x24] sm:$0xf]
    %v39 = vld [vmem:[#allocation2 + $0x28] sm:$0xf]
    %v40 = vld [vmem:[#allocation2 + $0x2c] sm:$0xf]
    %v41 = vld [vmem:[#allocation2 + $0x30] sm:$0xf]
    %v42 = vld [vmem:[#allocation2 + $0x34] sm:$0xf]
    %v43 = vld [vmem:[#allocation2 + $0x38] sm:$0xf]
    %v44 = vld [vmem:[#allocation2 + $0x3c] sm:$0xf]
    %v45 = vld [vmem:[#allocation2 + $0x40] sm:$0xf]
    %v46 = vld [vmem:[#allocation2 + $0x44] sm:$0xf]
    %v47 = vld [vmem:[#allocation2 + $0x48] sm:$0xf]
    %v48 = vld [vmem:[#allocation2 + $0x4c] sm:$0xf]
    %v49 = vld [vmem:[#allocation2 + $0x50] sm:$0xf]
    %v50 = vld [vmem:[#allocation2 + $0x54] sm:$0xf]
    %v51 = vld [vmem:[#allocation2 + $0x58] sm:$0xf]
    %v52 = vld [vmem:[#allocation2 + $0x5c] sm:$0xf]
    %v53 = vld [vmem:[#allocation2 + $0x60] sm:$0xf]
    %v54 = vld [vmem:[#allocation2 + $0x64] sm:$0xf]
    %v55 = vld [vmem:[#allocation2 + $0x68] sm:$0xf]
    %v56 = vld [vmem:[#allocation2 + $0x6c] sm:$0xf]
    %v57 = vld [vmem:[#allocation2 + $0x70] sm:$0xf]
    %v58 = vld [vmem:[#allocation2 + $0x74] sm:$0xf]
    %v59 = vld [vmem:[#allocation2 + $0x78] sm:$0xf]
    %v60 = vld [vmem:[#allocation2 + $0x7c] sm:$0xf]
    %62 = vst [vmem:[#allocation1] ss:$4 sm:$0xff] %v28
    %v63 = vld.sshfl [vmem:[#allocation1] sm:$0xff pattern:$0x73625140]
    %v64 = vld.sshfl [vmem:[#allocation1 + $0x8] sm:$0xff pattern:$0x73625140]
    %v67 = vpack.c.bf16 %v63, %v63
    %v68 = vpack.c.bf16 %v64, %v64
    %v69 = vld [vmem:[#allocation2 + $0x80] sm:$0x1]
    %v70 = vunpack.c.l.bf16 %v69
    %v71 = vperm.slane %v70, 0
    %v104 = vunpack.c.l.b16 %v29
    %v105 = vunpack.c.l.b16 %v30
    %v106 = vunpack.c.l.b16 %v31
    %v107 = vunpack.c.l.b16 %v32
    %v108 = vunpack.c.l.b16 %v33
    %v109 = vunpack.c.l.b16 %v34
    %v110 = vunpack.c.l.b16 %v35
    %v111 = vunpack.c.l.b16 %v36
    %v112 = vunpack.c.l.b16 %v37
    %v113 = vunpack.c.l.b16 %v38
    %v114 = vunpack.c.l.b16 %v39
    %v115 = vunpack.c.l.b16 %v40
    %v116 = vunpack.c.l.b16 %v41
    %v117 = vunpack.c.l.b16 %v42
    %v118 = vunpack.c.l.b16 %v43
    %v119 = vunpack.c.l.b16 %v44
    %v120 = vunpack.c.l.b16 %v45
    %v121 = vunpack.c.l.b16 %v46
    %v122 = vunpack.c.l.b16 %v47
    %v123 = vunpack.c.l.b16 %v48
    %v124 = vunpack.c.l.b16 %v49
    %v125 = vunpack.c.l.b16 %v50
    %v126 = vunpack.c.l.b16 %v51
    %v127 = vunpack.c.l.b16 %v52
    %v128 = vunpack.c.l.b16 %v53
    %v129 = vunpack.c.l.b16 %v54
    %v130 = vunpack.c.l.b16 %v55
    %v131 = vunpack.c.l.b16 %v56
    %v132 = vunpack.c.l.b16 %v57
    %v133 = vunpack.c.l.b16 %v58
    %v134 = vunpack.c.l.b16 %v59
    %v135 = vunpack.c.l.b16 %v60
    %v136 = vpack.c.b16 %v105, %v104
    %v137 = vpack.c.b16 %v107, %v106
    %v138 = vpack.c.b16 %v109, %v108
    %v139 = vpack.c.b16 %v111, %v110
    %v140 = vpack.c.b16 %v113, %v112
    %v141 = vpack.c.b16 %v115, %v114
    %v142 = vpack.c.b16 %v117, %v116
    %v143 = vpack.c.b16 %v119, %v118
    %v144 = vpack.c.b16 %v121, %v120
    %v145 = vpack.c.b16 %v123, %v122
    %v146 = vpack.c.b16 %v125, %v124
    %v147 = vpack.c.b16 %v127, %v126
    %v148 = vpack.c.b16 %v129, %v128
    %v149 = vpack.c.b16 %v131, %v130
    %v150 = vpack.c.b16 %v133, %v132
    %v151 = vpack.c.b16 %v135, %v134
    %168 = vmatpush.bf16.msra.mxu0 %v143
    %169 = vmatpush.bf16.msra.mxu0 %v142
    %170 = vmatpush.bf16.msra.mxu0 %v141
    %171 = vmatpush.bf16.msra.mxu0 %v140
    %172 = vmatpush.bf16.msra.mxu0 %v139
    %173 = vmatpush.bf16.msra.mxu0 %v138
    %174 = vmatpush.bf16.msra.mxu0 %v137
    %175 = vmatpush.bf16.msra.mxu0 %v136
    %176 = vmatmul.bf16.gmra.mxu0 %v67
    %v177 = vpop.f32.mrf.mxu0
    %v178 = vadd.f32 %v71, %v177
    %v179 = vpop.f32.mrf.mxu0
    %180 = vdwg.mxu0
    %181 = vmatpush.bf16.msra.mxu0 %v151
    %182 = vmatpush.bf16.msra.mxu0 %v150
    %183 = vmatpush.bf16.msra.mxu0 %v149
    %184 = vmatpush.bf16.msra.mxu0 %v148
    %185 = vmatpush.bf16.msra.mxu0 %v147
    %186 = vmatpush.bf16.msra.mxu0 %v146
    %187 = vmatpush.bf16.msra.mxu0 %v145
    %188 = vmatpush.bf16.msra.mxu0 %v144
    %189 = vmatmul.bf16.gmra.mxu0 %v68
    %v190 = vpop.f32.mrf.mxu0
    %v191 = vadd.f32 %v178, %v190
    %v192 = vpop.f32.mrf.mxu0
    %193 = vdwg.mxu0
    %v194 = vmul.f32 %v191, %v191
    %v195 = vmul.f32 %v191, %v194
    %v196 = vmul.f32 %v195, 0.044715
    %v197 = vadd.f32 %v191, %v196
    %v198 = vmul.f32 %v197, 0.7978846
    %v199 = vtanh.pop %v198
    %v200 = vadd.f32 %v199, 1.0
    %v201 = vmul.f32 %v200, 0.5
    %v202 = vmul.f32 %v191, %v201
    %v203 = vld [vmem:[#allocation2 + $0x84] sm:$0xf]
    %v204 = vld [vmem:[#allocation2 + $0x88] sm:$0xf]
    %v205 = vld [vmem:[#allocation2 + $0x8c] sm:$0xf]
    %v206 = vld [vmem:[#allocation2 + $0x90] sm:$0xf]
    %v207 = vld [vmem:[#allocation2 + $0x94] sm:$0xf]
    %v208 = vld [vmem:[#allocation2 + $0x98] sm:$0xf]
    %v209 = vld [vmem:[#allocation2 + $0x9c] sm:$0xf]
    %v210 = vld [vmem:[#allocation2 + $0xa0] sm:$0xf]
    %v211 = vld [vmem:[#allocation2 + $0xa4] sm:$0xf]
    %v212 = vld [vmem:[#allocation2 + $0xa8] sm:$0xf]
    %v213 = vld [vmem:[#allocation2 + $0xac] sm:$0xf]
    %v214 = vld [vmem:[#allocation2 + $0xb0] sm:$0xf]
    %v215 = vld [vmem:[#allocation2 + $0xb4] sm:$0xf]
    %v216 = vld [vmem:[#allocation2 + $0xb8] sm:$0xf]
    %v217 = vld [vmem:[#allocation2 + $0xbc] sm:$0xf]
    %v218 = vld [vmem:[#allocation2 + $0xc0] sm:$0xf]
    %v219 = vpack.c.bf16 %v202, %v202
    %v236 = vunpack.c.l.b16 %v203
    %v237 = vunpack.c.l.b16 %v204
    %v238 = vunpack.c.l.b16 %v205
    %v239 = vunpack.c.l.b16 %v206
    %v240 = vunpack.c.l.b16 %v207
    %v241 = vunpack.c.l.b16 %v208
    %v242 = vunpack.c.l.b16 %v209
    %v243 = vunpack.c.l.b16 %v210
    %v244 = vunpack.c.l.b16 %v211
    %v245 = vunpack.c.l.b16 %v212
    %v246 = vunpack.c.l.b16 %v213
    %v247 = vunpack.c.l.b16 %v214
    %v248 = vunpack.c.l.b16 %v215
    %v249 = vunpack.c.l.b16 %v216
    %v250 = vunpack.c.l.b16 %v217
    %v251 = vunpack.c.l.b16 %v218
    %v252 = vpack.c.b16 %v237, %v236
    %v253 = vpack.c.b16 %v239, %v238
    %v254 = vpack.c.b16 %v241, %v240
    %v255 = vpack.c.b16 %v243, %v242
    %v256 = vpack.c.b16 %v245, %v244
    %v257 = vpack.c.b16 %v247, %v246
    %v258 = vpack.c.b16 %v249, %v248
    %v259 = vpack.c.b16 %v251, %v250
    %268 = vmatpush.bf16.msra.mxu0 %v259
    %269 = vmatpush.bf16.msra.mxu0 %v258
    %270 = vmatpush.bf16.msra.mxu0 %v257
    %271 = vmatpush.bf16.msra.mxu0 %v256
    %272 = vmatpush.bf16.msra.mxu0 %v255
    %273 = vmatpush.bf16.msra.mxu0 %v254
    %274 = vmatpush.bf16.msra.mxu0 %v253
    %275 = vmatpush.bf16.msra.mxu0 %v252
    %276 = vmatmul.bf16.gmra.mxu0 %v219
    %v277 = vpop.f32.mrf.mxu0
    %v278 = vadd.f32 0.0, %v277
    %v279 = vpop.f32.mrf.mxu0
    %280 = vdwg.mxu0
    %v281 = vld [vmem:[#allocation2 + $0xc4] sm:$0xf]
    %v282 = vld [vmem:[#allocation2 + $0xc8] sm:$0xf]
    %v283 = vld [vmem:[#allocation2 + $0xcc] sm:$0xf]
    %v284 = vld [vmem:[#allocation2 + $0xd0] sm:$0xf]
    %v285 = vld [vmem:[#allocation2 + $0xd4] sm:$0xf]
    %v286 = vld [vmem:[#allocation2 + $0xd8] sm:$0xf]
    %v287 = vld [vmem:[#allocation2 + $0xdc] sm:$0xf]
    %v288 = vld [vmem:[#allocation2 + $0xe0] sm:$0xf]
    %v289 = vpack.c.bf16 %v278, %v278
    %v290 = vld [vmem:[#allocation2 + $0xe4] sm:$0x1]
    %v291 = vunpack.c.l.bf16 %v290
    %v292 = vperm.slane %v291, 0
    %v301 = vunpack.c.l.b16 %v281
    %v302 = vunpack.c.l.b16 %v282
    %v303 = vunpack.c.l.b16 %v283
    %v304 = vunpack.c.l.b16 %v284
    %v305 = vunpack.c.l.b16 %v285
    %v306 = vunpack.c.l.b16 %v286
    %v307 = vunpack.c.l.b16 %v287
    %v308 = vunpack.c.l.b16 %v288
    %v309 = vpack.c.b16 %v302, %v301
    %v310 = vpack.c.b16 %v304, %v303
    %v311 = vpack.c.b16 %v306, %v305
    %v312 = vpack.c.b16 %v308, %v307
    %vm317 = vcmask 523264
    %v319 = vsel %vm317, %v289, 0
    %321 = vmatpush.bf16.msra.mxu0 0
    %322 = vmatpush.bf16.msra.mxu0 0
    %323 = vmatpush.bf16.msra.mxu0 0
    %324 = vmatpush.bf16.msra.mxu0 0
    %325 = vmatpush.bf16.msra.mxu0 %v312
    %326 = vmatpush.bf16.msra.mxu0 %v311
    %327 = vmatpush.bf16.msra.mxu0 %v310
    %328 = vmatpush.bf16.msra.mxu0 %v309
    %329 = vmatmul.bf16.gmra.mxu0 %v319
    %v330 = vpop.f32.mrf.mxu0
    %v331 = vadd.f32 %v292, %v330
    %v332 = vpop.f32.mrf.mxu0
    %333 = vdwg.mxu0
    %v334 = vmul.f32 %v331, %v331
    %v335 = vmul.f32 %v331, %v334
    %v336 = vmul.f32 %v335, 0.044715
    %v337 = vadd.f32 %v331, %v336
    %v338 = vmul.f32 %v337, 0.7978846
    %v339 = vtanh.pop %v338
    %v340 = vadd.f32 %v339, 1.0
    %v341 = vmul.f32 %v340, 0.5
    %v342 = vmul.f32 %v331, %v341
    %v343 = vld [vmem:[#allocation2 + $0xe8] sm:$0xf]
    %v344 = vld [vmem:[#allocation2 + $0xec] sm:$0xf]
    %v345 = vld [vmem:[#allocation2 + $0xf0] sm:$0xf]
    %v346 = vld [vmem:[#allocation2 + $0xf4] sm:$0xf]
    %v347 = vld [vmem:[#allocation2 + $0xf8] sm:$0xf]
    %v348 = vld [vmem:[#allocation2 + $0xfc] sm:$0xf]
    %v349 = vld [vmem:[#allocation2 + $0x100] sm:$0xf]
    %v350 = vld [vmem:[#allocation2 + $0x104] sm:$0xf]
    %v351 = vpack.c.bf16 %v342, %v342
    %v352 = vld [vmem:[#allocation2 + $0x108] sm:$0x1]
    %v353 = vunpack.c.l.bf16 %v352
    %v354 = vperm.slane %v353, 0
    %v363 = vunpack.c.l.b16 %v343
    %v364 = vunpack.c.l.b16 %v344
    %v365 = vunpack.c.l.b16 %v345
    %v366 = vunpack.c.l.b16 %v346
    %v367 = vunpack.c.l.b16 %v347
    %v368 = vunpack.c.l.b16 %v348
    %v369 = vunpack.c.l.b16 %v349
    %v370 = vunpack.c.l.b16 %v350
    %v371 = vpack.c.b16 %v364, %v363
    %v372 = vpack.c.b16 %v366, %v365
    %v373 = vpack.c.b16 %v368, %v367
    %v374 = vpack.c.b16 %v370, %v369
    %v380 = vsel %vm317, %v351, 0
    %382 = vmatpush.bf16.msra.mxu0 0
    %383 = vmatpush.bf16.msra.mxu0 0
    %384 = vmatpush.bf16.msra.mxu0 0
    %385 = vmatpush.bf16.msra.mxu0 0
    %386 = vmatpush.bf16.msra.mxu0 %v374
    %387 = vmatpush.bf16.msra.mxu0 %v373
    %388 = vmatpush.bf16.msra.mxu0 %v372
    %389 = vmatpush.bf16.msra.mxu0 %v371
    %390 = vmatmul.bf16.gmra.mxu0 %v380
    %v391 = vpop.f32.mrf.mxu0
    %v392 = vadd.f32 %v354, %v391
    %v393 = vpop.f32.mrf.mxu0
    %394 = vdwg.mxu0
    %v395 = vmul.f32 %v392, %v392
    %vm396 = vcmask 517120
    %v397 = vsel %vm396, %v395, 0.0
    %398 = vadd.xlane.f32.xlu0 %v397
    %v399 = vpop.xlane.xlu0 %398
    %v400 = vrcp.pop 64.0
    %v401 = vmul.f32 64.0, %v400
    %v402 = vsub.f32 1.0, %v401
    %v403 = vmul.f32 %v400, %v402
    %v404 = vadd.f32 %v400, %v403
    %vm405 = vweird.f32 %v400
    %v406 = vsel %vm405, %v400, %v404
    %v407 = vmul.f32 %v399, %v406
    %v408 = vadd.f32 %v407, 1e-06
    %v409 = vrsqrt.pop %v408
    %v410 = vmul.f32 %v409, %v408
    %v411 = vmul.f32 %v410, %v409
    %v412 = vmul.f32 0.5, %v411
    %v413 = vsub.f32 1.5, %v412
    %v414 = vmul.f32 %v409, %v413
    %vm415 = vweird.f32 %v408
    %vm416 = vweird.f32 %v409
    %vm417 = vmor %vm415, %vm416
    %v418 = vsel %vm417, %v409, %v414
    %v419 = vmul.f32 %v392, %v418
    %v420 = vld [vmem:[#allocation2 + $0x10c] sm:$0xf]
    %v421 = vld [vmem:[#allocation2 + $0x110] sm:$0xf]
    %v422 = vld [vmem:[#allocation2 + $0x114] sm:$0xf]
    %v423 = vld [vmem:[#allocation2 + $0x118] sm:$0xf]
    %v424 = vld [vmem:[#allocation2 + $0x11c] sm:$0xf]
    %v425 = vld [vmem:[#allocation2 + $0x120] sm:$0xf]
    %v426 = vld [vmem:[#allocation2 + $0x124] sm:$0xf]
    %v427 = vld [vmem:[#allocation2 + $0x128] sm:$0xf]
    %v428 = vpack.c.bf16 %v419, %v419
    %v429 = vld [vmem:[#allocation2 + $0x12c] sm:$0x1]
    %v430 = vunpack.c.l.bf16 %v429
    %v431 = vperm.slane %v430, 0
    %v440 = vunpack.c.l.b16 %v420
    %v441 = vunpack.c.l.b16 %v421
    %v442 = vunpack.c.l.b16 %v422
    %v443 = vunpack.c.l.b16 %v423
    %v444 = vunpack.c.l.b16 %v424
    %v445 = vunpack.c.l.b16 %v425
    %v446 = vunpack.c.l.b16 %v426
    %v447 = vunpack.c.l.b16 %v427
    %v448 = vpack.c.b16 %v441, %v440
    %v449 = vpack.c.b16 %v443, %v442
    %v450 = vpack.c.b16 %v445, %v444
    %v451 = vpack.c.b16 %v447, %v446
    %v457 = vsel %vm317, %v428, 0
    %459 = vmatpush.bf16.msra.mxu0 0
    %460 = vmatpush.bf16.msra.mxu0 0
    %461 = vmatpush.bf16.msra.mxu0 0
    %462 = vmatpush.bf16.msra.mxu0 0
    %463 = vmatpush.bf16.msra.mxu0 %v451
    %464 = vmatpush.bf16.msra.mxu0 %v450
    %465 = vmatpush.bf16.msra.mxu0 %v449
    %466 = vmatpush.bf16.msra.mxu0 %v448
    %467 = vmatmul.bf16.gmra.mxu0 %v457
    %v468 = vpop.f32.mrf.mxu0
    %v469 = vadd.f32 %v431, %v468
    %v470 = vpop.f32.mrf.mxu0
    %471 = vdwg.mxu0
    %v472 = vmul.f32 %v469, %v469
    %v473 = vmul.f32 %v469, %v472
    %v474 = vmul.f32 %v473, 0.044715
    %v475 = vadd.f32 %v469, %v474
    %v476 = vmul.f32 %v475, 0.7978846
    %v477 = vtanh.pop %v476
    %v478 = vadd.f32 %v477, 1.0
    %v479 = vmul.f32 %v478, 0.5
    %v480 = vmul.f32 %v469, %v479
    %v481 = vld [vmem:[#allocation2 + $0x130] sm:$0xf]
    %v482 = vld [vmem:[#allocation2 + $0x134] sm:$0xf]
    %v483 = vld [vmem:[#allocation2 + $0x138] sm:$0xf]
    %v484 = vld [vmem:[#allocation2 + $0x13c] sm:$0xf]
    %v485 = vld [vmem:[#allocation2 + $0x140] sm:$0xf]
    %v486 = vld [vmem:[#allocation2 + $0x144] sm:$0xf]
    %v487 = vld [vmem:[#allocation2 + $0x148] sm:$0xf]
    %v488 = vld [vmem:[#allocation2 + $0x14c] sm:$0xf]
    %v489 = vld [vmem:[#allocation2 + $0x150] sm:$0xf]
    %v490 = vld [vmem:[#allocation2 + $0x154] sm:$0xf]
    %v491 = vld [vmem:[#allocation2 + $0x158] sm:$0xf]
    %v492 = vld [vmem:[#allocation2 + $0x15c] sm:$0xf]
    %v493 = vld [vmem:[#allocation2 + $0x160] sm:$0xf]
    %v494 = vld [vmem:[#allocation2 + $0x164] sm:$0xf]
    %v495 = vld [vmem:[#allocation2 + $0x168] sm:$0xf]
    %v496 = vld [vmem:[#allocation2 + $0x16c] sm:$0xf]
    %v497 = vpack.c.bf16 %v480, %v480
    %v498 = vld [vmem:[#allocation2 + $0x170] sm:$0x1]
    %v499 = vunpack.c.l.bf16 %v498
    %v500 = vperm.slane %v499, 0
    %v517 = vunpack.c.l.b16 %v481
    %v518 = vunpack.c.l.b16 %v482
    %v519 = vunpack.c.l.b16 %v483
    %v520 = vunpack.c.l.b16 %v484
    %v521 = vunpack.c.l.b16 %v485
    %v522 = vunpack.c.l.b16 %v486
    %v523 = vunpack.c.l.b16 %v487
    %v524 = vunpack.c.l.b16 %v488
    %v525 = vunpack.c.l.b16 %v489
    %v526 = vunpack.c.l.b16 %v490
    %v527 = vunpack.c.l.b16 %v491
    %v528 = vunpack.c.l.b16 %v492
    %v529 = vunpack.c.l.b16 %v493
    %v530 = vunpack.c.l.b16 %v494
    %v531 = vunpack.c.l.b16 %v495
    %v532 = vunpack.c.l.b16 %v496
    %v533 = vpack.c.b16 %v518, %v517
    %v534 = vpack.c.b16 %v520, %v519
    %v535 = vpack.c.b16 %v522, %v521
    %v536 = vpack.c.b16 %v524, %v523
    %v537 = vpack.c.b16 %v526, %v525
    %v538 = vpack.c.b16 %v528, %v527
    %v539 = vpack.c.b16 %v530, %v529
    %v540 = vpack.c.b16 %v532, %v531
    %549 = vmatpush.bf16.msra.mxu0 %v540
    %550 = vmatpush.bf16.msra.mxu0 %v539
    %551 = vmatpush.bf16.msra.mxu0 %v538
    %552 = vmatpush.bf16.msra.mxu0 %v537
    %553 = vmatpush.bf16.msra.mxu0 %v536
    %554 = vmatpush.bf16.msra.mxu0 %v535
    %555 = vmatpush.bf16.msra.mxu0 %v534
    %556 = vmatpush.bf16.msra.mxu0 %v533
    %557 = vmatmul.bf16.gmra.mxu0 %v497
    %v558 = vpop.f32.mrf.mxu0
    %v559 = vadd.f32 %v500, %v558
    %v560 = vpop.f32.mrf.mxu0
    %561 = vdwg.mxu0
    %v562 = vmul.f32 %v559, 0.5
    %v563 = vmul.f32 %v562, 1.442695
    %v564 = vpow.pop %v563
    %565 = vst [vmem:[#allocation1] ss:$4 sm:$0xff] %v28
    %v566 = vld.sshfl [vmem:[#allocation1 + $0x10] sm:$0xff pattern:$0x73625140]
    %567 = vrot.lane.b32.xlu0 %v566, 64
    %v568 = vpop.permute.xlu0 %567
    %v570 = vmul.f32 %v564, %v568
    %572 = vrot.lane.b32.xlu0 %v570, 64
    %v573 = vpop.permute.xlu0 %572
    %v575 = vadd.f32 %v559, %v573
    %v576 = vld [vmem:[#allocation2 + $0x174] sm:$0xf]
    %v577 = vld [vmem:[#allocation2 + $0x178] sm:$0xf]
    %v578 = vld [vmem:[#allocation2 + $0x17c] sm:$0xf]
    %v579 = vld [vmem:[#allocation2 + $0x180] sm:$0xf]
    %v580 = vld [vmem:[#allocation2 + $0x184] sm:$0xf]
    %v581 = vld [vmem:[#allocation2 + $0x188] sm:$0xf]
    %v582 = vld [vmem:[#allocation2 + $0x18c] sm:$0xf]
    %v583 = vld [vmem:[#allocation2 + $0x190] sm:$0xf]
    %v584 = vpack.c.bf16 %v575, %v575
    %v585 = vld [vmem:[#allocation2 + $0x194] sm:$0x1]
    %v586 = vunpack.c.l.bf16 %v585
    %v587 = vperm.slane %v586, 0
    %v596 = vunpack.c.l.b16 %v576
    %v597 = vunpack.c.l.b16 %v577
    %v598 = vunpack.c.l.b16 %v578
    %v599 = vunpack.c.l.b16 %v579
    %v600 = vunpack.c.l.b16 %v580
    %v601 = vunpack.c.l.b16 %v581
    %v602 = vunpack.c.l.b16 %v582
    %v603 = vunpack.c.l.b16 %v583
    %v604 = vpack.c.b16 %v597, %v596
    %v605 = vpack.c.b16 %v599, %v598
    %v606 = vpack.c.b16 %v601, %v600
    %v607 = vpack.c.b16 %v603, %v602
    %v613 = vsel %vm317, %v584, 0
    %615 = vmatpush.bf16.msra.mxu0 0
    %616 = vmatpush.bf16.msra.mxu0 0
    %617 = vmatpush.bf16.msra.mxu0 0
    %618 = vmatpush.bf16.msra.mxu0 0
    %619 = vmatpush.bf16.msra.mxu0 %v607
    %620 = vmatpush.bf16.msra.mxu0 %v606
    %621 = vmatpush.bf16.msra.mxu0 %v605
    %622 = vmatpush.bf16.msra.mxu0 %v604
    %623 = vmatmul.bf16.gmra.mxu0 %v613
    %v624 = vpop.f32.mrf.mxu0
    %v625 = vadd.f32 %v587, %v624
    %v626 = vpop.f32.mrf.mxu0
    %627 = vdwg.mxu0
    %v628 = vmul.f32 %v625, %v625
    %v629 = vmul.f32 %v625, %v628
    %v630 = vmul.f32 %v629, 0.044715
    %v631 = vadd.f32 %v625, %v630
    %v632 = vmul.f32 %v631, 0.7978846
    %v633 = vtanh.pop %v632
    %v634 = vadd.f32 %v633, 1.0
    %v635 = vmul.f32 %v634, 0.5
    %v636 = vmul.f32 %v625, %v635
    %v637 = vld [vmem:[#allocation2 + $0x198] sm:$0xf]
    %v638 = vld [vmem:[#allocation2 + $0x19c] sm:$0xf]
    %v639 = vld [vmem:[#allocation2 + $0x1a0] sm:$0xf]
    %v640 = vld [vmem:[#allocation2 + $0x1a4] sm:$0xf]
    %v641 = vld [vmem:[#allocation2 + $0x1a8] sm:$0xf]
    %v642 = vld [vmem:[#allocation2 + $0x1ac] sm:$0xf]
    %v643 = vld [vmem:[#allocation2 + $0x1b0] sm:$0xf]
    %v644 = vld [vmem:[#allocation2 + $0x1b4] sm:$0xf]
    %v645 = vld [vmem:[#allocation2 + $0x1b8] sm:$0xf]
    %v646 = vld [vmem:[#allocation2 + $0x1bc] sm:$0xf]
    %v647 = vld [vmem:[#allocation2 + $0x1c0] sm:$0xf]
    %v648 = vld [vmem:[#allocation2 + $0x1c4] sm:$0xf]
    %v649 = vld [vmem:[#allocation2 + $0x1c8] sm:$0xf]
    %v650 = vld [vmem:[#allocation2 + $0x1cc] sm:$0xf]
    %v651 = vld [vmem:[#allocation2 + $0x1d0] sm:$0xf]
    %v652 = vld [vmem:[#allocation2 + $0x1d4] sm:$0xf]
    %v653 = vpack.c.bf16 %v636, %v636
    %v654 = vld [vmem:[#allocation2 + $0x1d8] sm:$0x1]
    %v655 = vunpack.c.l.bf16 %v654
    %v656 = vperm.slane %v655, 0
    %v673 = vunpack.c.l.b16 %v637
    %v674 = vunpack.c.l.b16 %v638
    %v675 = vunpack.c.l.b16 %v639
    %v676 = vunpack.c.l.b16 %v640
    %v677 = vunpack.c.l.b16 %v641
    %v678 = vunpack.c.l.b16 %v642
    %v679 = vunpack.c.l.b16 %v643
    %v680 = vunpack.c.l.b16 %v644
    %v681 = vunpack.c.l.b16 %v645
    %v682 = vunpack.c.l.b16 %v646
    %v683 = vunpack.c.l.b16 %v647
    %v684 = vunpack.c.l.b16 %v648
    %v685 = vunpack.c.l.b16 %v649
    %v686 = vunpack.c.l.b16 %v650
    %v687 = vunpack.c.l.b16 %v651
    %v688 = vunpack.c.l.b16 %v652
    %v689 = vpack.c.b16 %v674, %v673
    %v690 = vpack.c.b16 %v676, %v675
    %v691 = vpack.c.b16 %v678, %v677
    %v692 = vpack.c.b16 %v680, %v679
    %v693 = vpack.c.b16 %v682, %v681
    %v694 = vpack.c.b16 %v684, %v683
    %v695 = vpack.c.b16 %v686, %v685
    %v696 = vpack.c.b16 %v688, %v687
    %705 = vmatpush.bf16.msra.mxu0 %v696
    %706 = vmatpush.bf16.msra.mxu0 %v695
    %707 = vmatpush.bf16.msra.mxu0 %v694
    %708 = vmatpush.bf16.msra.mxu0 %v693
    %709 = vmatpush.bf16.msra.mxu0 %v692
    %710 = vmatpush.bf16.msra.mxu0 %v691
    %711 = vmatpush.bf16.msra.mxu0 %v690
    %712 = vmatpush.bf16.msra.mxu0 %v689
    %713 = vmatmul.bf16.gmra.mxu0 %v653
    %v714 = vpop.f32.mrf.mxu0
    %v715 = vadd.f32 %v656, %v714
    %v716 = vpop.f32.mrf.mxu0
    %717 = vdwg.mxu0
    %v718 = vld [vmem:[#allocation2 + $0x1dc] sm:$0xf]
    %v719 = vld [vmem:[#allocation2 + $0x1e0] sm:$0xf]
    %v720 = vld [vmem:[#allocation2 + $0x1e4] sm:$0xf]
    %v721 = vld [vmem:[#allocation2 + $0x1e8] sm:$0xf]
    %v722 = vld [vmem:[#allocation2 + $0x1ec] sm:$0xf]
    %v723 = vld [vmem:[#allocation2 + $0x1f0] sm:$0xf]
    %v724 = vld [vmem:[#allocation2 + $0x1f4] sm:$0xf]
    %v725 = vld [vmem:[#allocation2 + $0x1f8] sm:$0xf]
    %v726 = vld [vmem:[#allocation2 + $0x1fc] sm:$0xf]
    %v727 = vld [vmem:[#allocation2 + $0x200] sm:$0xf]
    %v728 = vld [vmem:[#allocation2 + $0x204] sm:$0xf]
    %v729 = vld [vmem:[#allocation2 + $0x208] sm:$0xf]
    %v730 = vld [vmem:[#allocation2 + $0x20c] sm:$0xf]
    %v731 = vld [vmem:[#allocation2 + $0x210] sm:$0xf]
    %v732 = vld [vmem:[#allocation2 + $0x214] sm:$0xf]
    %v733 = vld [vmem:[#allocation2 + $0x218] sm:$0xf]
    %v750 = vunpack.c.l.b16 %v718
    %v751 = vunpack.c.l.b16 %v719
    %v752 = vunpack.c.l.b16 %v720
    %v753 = vunpack.c.l.b16 %v721
    %v754 = vunpack.c.l.b16 %v722
    %v755 = vunpack.c.l.b16 %v723
    %v756 = vunpack.c.l.b16 %v724
    %v757 = vunpack.c.l.b16 %v725
    %v758 = vunpack.c.l.b16 %v726
    %v759 = vunpack.c.l.b16 %v727
    %v760 = vunpack.c.l.b16 %v728
    %v761 = vunpack.c.l.b16 %v729
    %v762 = vunpack.c.l.b16 %v730
    %v763 = vunpack.c.l.b16 %v731
    %v764 = vunpack.c.l.b16 %v732
    %v765 = vunpack.c.l.b16 %v733
    %v766 = vpack.c.b16 %v751, %v750
    %v767 = vpack.c.b16 %v753, %v752
    %v768 = vpack.c.b16 %v755, %v754
    %v769 = vpack.c.b16 %v757, %v756
    %v770 = vpack.c.b16 %v759, %v758
    %v771 = vpack.c.b16 %v761, %v760
    %v772 = vpack.c.b16 %v763, %v762
    %v773 = vpack.c.b16 %v765, %v764
    %782 = vmatpush.bf16.msra.mxu0 %v773
    %783 = vmatpush.bf16.msra.mxu0 %v772
    %784 = vmatpush.bf16.msra.mxu0 %v771
    %785 = vmatpush.bf16.msra.mxu0 %v770
    %786 = vmatpush.bf16.msra.mxu0 %v769
    %787 = vmatpush.bf16.msra.mxu0 %v768
    %788 = vmatpush.bf16.msra.mxu0 %v767
    %789 = vmatpush.bf16.msra.mxu0 %v766
    %790 = vmatmul.bf16.gmra.mxu0 %v653
    %v791 = vpop.f32.mrf.mxu0
    %v792 = vadd.f32 0.0, %v791
    %v793 = vpop.f32.mrf.mxu0
    %794 = vdwg.mxu0
    %v795 = vld [vmem:[#allocation2 + $0x21c] sm:$0xf]
    %v796 = vld [vmem:[#allocation2 + $0x220] sm:$0xf]
    %v797 = vld [vmem:[#allocation2 + $0x224] sm:$0xf]
    %v798 = vld [vmem:[#allocation2 + $0x228] sm:$0xf]
    %v799 = vld [vmem:[#allocation2 + $0x22c] sm:$0xf]
    %v800 = vld [vmem:[#allocation2 + $0x230] sm:$0xf]
    %v801 = vld [vmem:[#allocation2 + $0x234] sm:$0xf]
    %v802 = vld [vmem:[#allocation2 + $0x238] sm:$0xf]
    %v803 = vpack.c.bf16 %v792, %v792
    %v804 = vld [vmem:[#allocation2 + $0x23c] sm:$0x1]
    %v805 = vunpack.c.l.bf16 %v804
    %v806 = vperm.slane %v805, 0
    %v815 = vunpack.c.l.b16 %v795
    %v816 = vunpack.c.l.b16 %v796
    %v817 = vunpack.c.l.b16 %v797
    %v818 = vunpack.c.l.b16 %v798
    %v819 = vunpack.c.l.b16 %v799
    %v820 = vunpack.c.l.b16 %v800
    %v821 = vunpack.c.l.b16 %v801
    %v822 = vunpack.c.l.b16 %v802
    %v823 = vpack.c.b16 %v816, %v815
    %v824 = vpack.c.b16 %v818, %v817
    %v825 = vpack.c.b16 %v820, %v819
    %v826 = vpack.c.b16 %v822, %v821
    %v832 = vsel %vm317, %v803, 0
    %834 = vmatpush.bf16.msra.mxu0 0
    %835 = vmatpush.bf16.msra.mxu0 0
    %836 = vmatpush.bf16.msra.mxu0 0
    %837 = vmatpush.bf16.msra.mxu0 0
    %838 = vmatpush.bf16.msra.mxu0 %v826
    %839 = vmatpush.bf16.msra.mxu0 %v825
    %840 = vmatpush.bf16.msra.mxu0 %v824
    %841 = vmatpush.bf16.msra.mxu0 %v823
    %842 = vmatmul.bf16.gmra.mxu0 %v832
    %v843 = vpop.f32.mrf.mxu0
    %v844 = vadd.f32 %v806, %v843
    %v845 = vpop.f32.mrf.mxu0
    %846 = vdwg.mxu0
    %v847 = vmul.f32 %v844, %v844
    %v848 = vmul.f32 %v844, %v847
    %v849 = vmul.f32 %v848, 0.044715
    %v850 = vadd.f32 %v844, %v849
    %v851 = vmul.f32 %v850, 0.7978846
    %v852 = vtanh.pop %v851
    %v853 = vadd.f32 %v852, 1.0
    %v854 = vmul.f32 %v853, 0.5
    %v855 = vmul.f32 %v844, %v854
    %v856 = vld [vmem:[#allocation2 + $0x240] sm:$0xf]
    %v857 = vld [vmem:[#allocation2 + $0x244] sm:$0xf]
    %v858 = vld [vmem:[#allocation2 + $0x248] sm:$0xf]
    %v859 = vld [vmem:[#allocation2 + $0x24c] sm:$0xf]
    %v860 = vld [vmem:[#allocation2 + $0x250] sm:$0xf]
    %v861 = vld [vmem:[#allocation2 + $0x254] sm:$0xf]
    %v862 = vld [vmem:[#allocation2 + $0x258] sm:$0xf]
    %v863 = vld [vmem:[#allocation2 + $0x25c] sm:$0xf]
    %v864 = vld [vmem:[#allocation2 + $0x260] sm:$0xf]
    %v865 = vld [vmem:[#allocation2 + $0x264] sm:$0xf]
    %v866 = vld [vmem:[#allocation2 + $0x268] sm:$0xf]
    %v867 = vld [vmem:[#allocation2 + $0x26c] sm:$0xf]
    %v868 = vld [vmem:[#allocation2 + $0x270] sm:$0xf]
    %v869 = vld [vmem:[#allocation2 + $0x274] sm:$0xf]
    %v870 = vld [vmem:[#allocation2 + $0x278] sm:$0xf]
    %v871 = vld [vmem:[#allocation2 + $0x27c] sm:$0xf]
    %v872 = vpack.c.bf16 %v855, %v855
    %v873 = vld [vmem:[#allocation2 + $0x2c0] sm:$0x1]
    %v874 = vunpack.c.l.bf16 %v873
    %v875 = vperm.slane %v874, 0
    %v892 = vunpack.c.l.b16 %v856
    %v893 = vunpack.c.l.b16 %v857
    %v894 = vunpack.c.l.b16 %v858
    %v895 = vunpack.c.l.b16 %v859
    %v896 = vunpack.c.l.b16 %v860
    %v897 = vunpack.c.l.b16 %v861
    %v898 = vunpack.c.l.b16 %v862
    %v899 = vunpack.c.l.b16 %v863
    %v900 = vunpack.c.l.b16 %v864
    %v901 = vunpack.c.l.b16 %v865
    %v902 = vunpack.c.l.b16 %v866
    %v903 = vunpack.c.l.b16 %v867
    %v904 = vunpack.c.l.b16 %v868
    %v905 = vunpack.c.l.b16 %v869
    %v906 = vunpack.c.l.b16 %v870
    %v907 = vunpack.c.l.b16 %v871
    %v908 = vpack.c.b16 %v893, %v892
    %v909 = vpack.c.b16 %v895, %v894
    %v910 = vpack.c.b16 %v897, %v896
    %v911 = vpack.c.b16 %v899, %v898
    %v912 = vpack.c.b16 %v901, %v900
    %v913 = vpack.c.b16 %v903, %v902
    %v914 = vpack.c.b16 %v905, %v904
    %v915 = vpack.c.b16 %v907, %v906
    %924 = vmatpush.bf16.msra.mxu0 %v915
    %925 = vmatpush.bf16.msra.mxu0 %v914
    %926 = vmatpush.bf16.msra.mxu0 %v913
    %927 = vmatpush.bf16.msra.mxu0 %v912
    %928 = vmatpush.bf16.msra.mxu0 %v911
    %929 = vmatpush.bf16.msra.mxu0 %v910
    %930 = vmatpush.bf16.msra.mxu0 %v909
    %931 = vmatpush.bf16.msra.mxu0 %v908
    %932 = vmatmul.bf16.gmra.mxu0 %v872
    %v933 = vpop.f32.mrf.mxu0
    %v934 = vadd.f32 %v875, %v933
    %v935 = vpop.f32.mrf.mxu0
    %936 = vdwg.mxu0
    %v937 = vld [vmem:[#allocation2 + $0x280] sm:$0xf]
    %v938 = vld [vmem:[#allocation2 + $0x284] sm:$0xf]
    %v939 = vld [vmem:[#allocation2 + $0x288] sm:$0xf]
    %v940 = vld [vmem:[#allocation2 + $0x28c] sm:$0xf]
    %v941 = vld [vmem:[#allocation2 + $0x290] sm:$0xf]
    %v942 = vld [vmem:[#allocation2 + $0x294] sm:$0xf]
    %v943 = vld [vmem:[#allocation2 + $0x298] sm:$0xf]
    %v944 = vld [vmem:[#allocation2 + $0x29c] sm:$0xf]
    %v945 = vld [vmem:[#allocation2 + $0x2a0] sm:$0xf]
    %v946 = vld [vmem:[#allocation2 + $0x2a4] sm:$0xf]
    %v947 = vld [vmem:[#allocation2 + $0x2a8] sm:$0xf]
    %v948 = vld [vmem:[#allocation2 + $0x2ac] sm:$0xf]
    %v949 = vld [vmem:[#allocation2 + $0x2b0] sm:$0xf]
    %v950 = vld [vmem:[#allocation2 + $0x2b4] sm:$0xf]
    %v951 = vld [vmem:[#allocation2 + $0x2b8] sm:$0xf]
    %v952 = vld [vmem:[#allocation2 + $0x2bc] sm:$0xf]
    %v953 = vld [vmem:[#allocation2 + $0x2c4] sm:$0x1]
    %v954 = vunpack.c.l.bf16 %v953
    %v955 = vperm.slane %v954, 0
    %v972 = vunpack.c.l.b16 %v937
    %v973 = vunpack.c.l.b16 %v938
    %v974 = vunpack.c.l.b16 %v939
    %v975 = vunpack.c.l.b16 %v940
    %v976 = vunpack.c.l.b16 %v941
    %v977 = vunpack.c.l.b16 %v942
    %v978 = vunpack.c.l.b16 %v943
    %v979 = vunpack.c.l.b16 %v944
    %v980 = vunpack.c.l.b16 %v945
    %v981 = vunpack.c.l.b16 %v946
    %v982 = vunpack.c.l.b16 %v947
    %v983 = vunpack.c.l.b16 %v948
    %v984 = vunpack.c.l.b16 %v949
    %v985 = vunpack.c.l.b16 %v950
    %v986 = vunpack.c.l.b16 %v951
    %v987 = vunpack.c.l.b16 %v952
    %v988 = vpack.c.b16 %v973, %v972
    %v989 = vpack.c.b16 %v975, %v974
    %v990 = vpack.c.b16 %v977, %v976
    %v991 = vpack.c.b16 %v979, %v978
    %v992 = vpack.c.b16 %v981, %v980
    %v993 = vpack.c.b16 %v983, %v982
    %v994 = vpack.c.b16 %v985, %v984
    %v995 = vpack.c.b16 %v987, %v986
    %1004 = vmatpush.bf16.msra.mxu0 %v995
    %1005 = vmatpush.bf16.msra.mxu0 %v994
    %1006 = vmatpush.bf16.msra.mxu0 %v993
    %1007 = vmatpush.bf16.msra.mxu0 %v992
    %1008 = vmatpush.bf16.msra.mxu0 %v991
    %1009 = vmatpush.bf16.msra.mxu0 %v990
    %1010 = vmatpush.bf16.msra.mxu0 %v989
    %1011 = vmatpush.bf16.msra.mxu0 %v988
    %1012 = vmatmul.bf16.gmra.mxu0 %v872
    %v1013 = vpop.f32.mrf.mxu0
    %v1014 = vadd.f32 %v955, %v1013
    %v1015 = vpop.f32.mrf.mxu0
    %1016 = vdwg.mxu0
    %1017 = vst [vmem:[%s2] sm:$0x3] %v934
    %1018 = vst [vmem:[%s2 + $0x2] sm:$0x3] %v1014
    %1019 = vst [vmem:[%s2 + $0x4] sm:$0x3] %v715
    // Predicated region
    $region14: #{the_model_forward.1} parent=1 // pred_check
      _
    $region15: #{the_model_forward.1} parent=1 // pred_check_branch
      %1021 = sbr.rel (0) target = $region17
    $region16: #{the_model_forward.1} parent=1 // pred_region
      _
    $region17: #{the_model_forward.1} parent=1 // pred_fallthru
      _
    // Predicated region
    $region18: #{the_model_forward.1} parent=1 // pred_check
      _
    $region19: #{the_model_forward.1} parent=1 // pred_check_branch
      %1023 = sbr.rel (0) target = $region21
    $region20: #{the_model_forward.1} parent=1 // pred_region
      _
    $region21: #{the_model_forward.1} parent=1 // pred_fallthru
      _
    %1024 = vsyncpa [#allocation3], 1

</llo_original>
